<compile_context>
chip_gen: v6e
topology: v6e:2x2x1
jax: 0.10.0
libtpu: 0.0.40
codegen_flags: <defaults>
</compile_context>

<pallas_src>
import functools

import jax
import jax.numpy as jnp
from jax.experimental import pallas as pl
from jax.experimental.pallas import tpu as pltpu

LOG_STD_MIN = -20.0
LOG_STD_MAX = 2.0
NEG_SLOPE = 0.1


def _round_up(x, m):
    return ((x + m - 1) // m) * m


def _policy_kernel(x_ref,
                   w1_ref, b1_ref,
                   w2_ref, b2_ref,
                   w3_ref, b3_ref,
                   wh_ref, bh_ref,
                   out_ref):
    """One batch tile: 3 hidden layers + fused (mean||log_std) head, all in VMEM."""

    def leaky(v):
        # max(v, 0.1*v) == LeakyReLU_0.1(v); single mul+max on the VALU.
        return jnp.maximum(v, NEG_SLOPE * v)

    # bf16 operands -> full-rate MXU; f32 accumulation + f32 bias/activation math.
    x = x_ref[...]
    h1 = leaky(jnp.dot(x, w1_ref[...], preferred_element_type=jnp.float32)
               + b1_ref[...])
    h2 = leaky(jnp.dot(h1.astype(jnp.bfloat16), w2_ref[...],
                       preferred_element_type=jnp.float32) + b2_ref[...])
    h3 = leaky(jnp.dot(h2.astype(jnp.bfloat16), w3_ref[...],
                       preferred_element_type=jnp.float32) + b3_ref[...])

    # Fused head: one matmul produces [TB, 2A] = mean || log_std.
    heads = jnp.dot(h3.astype(jnp.bfloat16), wh_ref[...],
                    preferred_element_type=jnp.float32) + bh_ref[...]

    num_actions = out_ref.shape[-1] // 2
    lane = jax.lax.broadcasted_iota(jnp.int32, heads.shape, 1)
    clipped = jnp.clip(heads, LOG_STD_MIN, LOG_STD_MAX)
    # First A lanes = mean (unclipped), last A lanes = log_std (clamped).
    out_ref[...] = jnp.where(lane < num_actions, heads, clipped).astype(out_ref.dtype)

    # TODO(synk): evaluate()/get_action() sampling (Normal sample, tanh squash, log_prob)
    # could be fused here as an EUP-side epilogue if used in an RL inference loop.


def _vmem_budget_bytes(tb, num_inputs, hidden_dim, num_actions):
    """Conservative VMEM budget: resident weights + double-buffered IO tiles + activations."""
    bf16, f32 = 2, 4
    weights = (num_inputs * hidden_dim
               + 2 * hidden_dim * hidden_dim
               + hidden_dim * 2 * num_actions) * bf16
    biases = (3 * hidden_dim + 2 * num_actions) * f32
    io = 2 * (tb * num_inputs * bf16 + tb * 2 * num_actions * f32)   # double-buffered
    acts = 4 * tb * hidden_dim * f32
    total = 2 * (weights + biases + io + acts)                        # 2x headroom
    # Stay well under v7x's 64 MiB physical VMEM.
    return int(min(max(total, 8 << 20), 48 << 20))


def policy_net_forward(state, params):
    """state: [B, num_inputs] float32. Returns (mean, log_std), each [B, num_actions] f32."""
    B, num_inputs = state.shape
    hidden_dim = params["w1"].shape[1]
    num_actions = params["wm"].shape[1]

    # Fuse the two heads into a single [H, 2A] weight / [1, 2A] bias.
    wh = jnp.concatenate([params["wm"], params["ws"]], axis=1)
    bh = jnp.concatenate([params["bm"], params["bs"]], axis=1)

    # bf16 matmul operands; biases stay f32 (added post-accumulation).
    w1 = params["w1"].astype(jnp.bfloat16)
    w2 = params["w2"].astype(jnp.bfloat16)
    w3 = params["w3"].astype(jnp.bfloat16)
    wh = wh.astype(jnp.bfloat16)
    b1, b2, b3 = params["b1"], params["b2"], params["b3"]

    # Batch tile: multiple of 8 sublanes, up to 128; pad batch to a tile multiple.
    tb = 128 if B >= 128 else _round_up(B, 8)
    b_pad = _round_up(B, tb)
    x = state.astype(jnp.bfloat16)
    if b_pad != B:
        x = jnp.pad(x, ((0, b_pad - B), (0, 0)))

    grid = (pl.cdiv(b_pad, tb),)
    const = lambda i: (0, 0)          # weights/biases: VMEM-resident across grid steps
    batch = lambda i: (i, 0)          # state/output: tiled over batch

    out = pl.pallas_call(
        _policy_kernel,
        out_shape=jax.ShapeDtypeStruct((b_pad, 2 * num_actions), jnp.float32),
        grid=grid,
        in_specs=[
            pl.BlockSpec((tb, num_inputs), batch),
            pl.BlockSpec((num_inputs, hidden_dim), const),
            pl.BlockSpec((1, hidden_dim), const),
            pl.BlockSpec((hidden_dim, hidden_dim), const),
            pl.BlockSpec((1, hidden_dim), const),
            pl.BlockSpec((hidden_dim, hidden_dim), const),
            pl.BlockSpec((1, hidden_dim), const),
            pl.BlockSpec((hidden_dim, 2 * num_actions), const),
            pl.BlockSpec((1, 2 * num_actions), const),
        ],
        out_specs=pl.BlockSpec((tb, 2 * num_actions), batch),
        compiler_params=pltpu.CompilerParams(
            dimension_semantics=("parallel",),
            vmem_limit_bytes=_vmem_budget_bytes(tb, num_inputs, hidden_dim, num_actions),
        ),
    )(x, w1, b1, w2, b2, w3, b3, wh, bh)

    mean = out[:B, :num_actions]
    log_std = out[:B, num_actions:]
    return mean, log_std


def init_params(key, num_inputs, num_actions, hidden_dim):
    """Deterministic PyTorch-Linear-style init: U(-1/sqrt(fan_in), 1/sqrt(fan_in))."""
    def linear(k, fan_in, fan_out):
        kw, kb = jax.random.split(k)
        bound = 1.0 / jnp.sqrt(jnp.float32(fan_in))
        w = jax.random.uniform(kw, (fan_in, fan_out), jnp.float32, -bound, bound)
        b = jax.random.uniform(kb, (1, fan_out), jnp.float32, -bound, bound)
        return w, b

    k1, k2, k3, km, ks = jax.random.split(key, 5)
    w1, b1 = linear(k1, num_inputs, hidden_dim)
    w2, b2 = linear(k2, hidden_dim, hidden_dim)
    w3, b3 = linear(k3, hidden_dim, hidden_dim)
    wm, bm = linear(km, hidden_dim, num_actions)
    ws, bs = linear(ks, hidden_dim, num_actions)
    return dict(w1=w1, b1=b1, w2=w2, b2=b2, w3=w3, b3=b3,
                wm=wm, bm=bm, ws=ws, bs=bs)


def reference_forward_f32(state, params):
    """Pure-JAX f32 reference mirroring the PyTorch forward exactly."""
    def leaky(v):
        return jnp.where(v >= 0, v, NEG_SLOPE * v)
    h = leaky(state @ params["w1"] + params["b1"])
    h = leaky(h @ params["w2"] + params["b2"])
    h = leaky(h @ params["w3"] + params["b3"])
    mean = h @ params["wm"] + params["bm"]
    log_std = jnp.clip(h @ params["ws"] + params["bs"], LOG_STD_MIN, LOG_STD_MAX)
    return mean, log_std


def reference_forward_bf16(state, params):
    """Pure-JAX reference mirroring the kernel's bf16-operand / f32-accumulate numerics."""
    bf16 = functools.partial(jnp.asarray, dtype=jnp.bfloat16)

    def leaky(v):
        return jnp.maximum(v, NEG_SLOPE * v)

    def dot(a, w):
        return jnp.dot(bf16(a), bf16(w), preferred_element_type=jnp.float32)

    h = leaky(dot(state, params["w1"]) + params["b1"])
    h = leaky(dot(h, params["w2"]) + params["b2"])
    h = leaky(dot(h, params["w3"]) + params["b3"])
    mean = dot(h, params["wm"]) + params["bm"]
    log_std = jnp.clip(dot(h, params["ws"]) + params["bs"], LOG_STD_MIN, LOG_STD_MAX)
    return mean, log_std


if __name__ == "__main__":
    num_inputs, num_actions, hidden_dim = 16, 4, 32
    batch = 2

    key = jax.random.PRNGKey(0)
    k_params, k_state = jax.random.split(key)
    params = init_params(k_params, num_inputs, num_actions, hidden_dim)
    state = jax.random.normal(k_state, (batch, num_inputs), jnp.float32)

    mean, log_std = policy_net_forward(state, params)
    jax.block_until_ready((mean, log_std))

    assert mean.shape == (batch, num_actions)
    assert log_std.shape == (batch, num_actions)

    # Tight check against a reference that mirrors the kernel's bf16/f32 numerics.
    ref_mean_bf16, ref_ls_bf16 = reference_forward_bf16(state, params)
    assert jnp.allclose(mean, ref_mean_bf16, atol=1e-2, rtol=1e-2)
    assert jnp.allclose(log_std, ref_ls_bf16, atol=1e-2, rtol=1e-2)

    # Looser check against the exact f32 PyTorch-equivalent forward (bf16 operand error).
    ref_mean_f32, ref_ls_f32 = reference_forward_f32(state, params)
    assert jnp.allclose(mean, ref_mean_f32, atol=1e-1, rtol=1e-1)
    assert jnp.allclose(log_std, ref_ls_f32, atol=1e-1, rtol=1e-1)

    print("KERNEL_OK")
</pallas_src>

<mosaic_0001>
module attributes {stable_mosaic.version = 11 : i64} {
  func.func @_policy_kernel(%arg0: i32, %arg1: memref<8x16xbf16, #tpu.memory_space<vmem>>, %arg2: memref<16x32xbf16, #tpu.memory_space<vmem>>, %arg3: memref<1x32xf32, #tpu.memory_space<vmem>>, %arg4: memref<32x32xbf16, #tpu.memory_space<vmem>>, %arg5: memref<1x32xf32, #tpu.memory_space<vmem>>, %arg6: memref<32x32xbf16, #tpu.memory_space<vmem>>, %arg7: memref<1x32xf32, #tpu.memory_space<vmem>>, %arg8: memref<32x8xbf16, #tpu.memory_space<vmem>>, %arg9: memref<1x8xf32, #tpu.memory_space<vmem>>, %arg10: memref<8x8xf32, #tpu.memory_space<vmem>>) attributes {dimension_semantics = [#tpu.dimension_semantics<parallel>], iteration_bounds = array<i64: 1>, scalar_prefetch = 0 : i64, scratch_operands = 0 : i64, tpu.core_type = #tpu.core_type<tc>, window_params = [{transform_indices = @transform_0, window_bounds = array<i64: 8, 16>}, {pipeline_mode = #tpu.pipeline_mode<synchronous>, transform_indices = @transform_1, window_bounds = array<i64: 16, 32>}, {pipeline_mode = #tpu.pipeline_mode<synchronous>, transform_indices = @transform_2, window_bounds = array<i64: 1, 32>}, {pipeline_mode = #tpu.pipeline_mode<synchronous>, transform_indices = @transform_3, window_bounds = array<i64: 32, 32>}, {pipeline_mode = #tpu.pipeline_mode<synchronous>, transform_indices = @transform_4, window_bounds = array<i64: 1, 32>}, {pipeline_mode = #tpu.pipeline_mode<synchronous>, transform_indices = @transform_5, window_bounds = array<i64: 32, 32>}, {pipeline_mode = #tpu.pipeline_mode<synchronous>, transform_indices = @transform_6, window_bounds = array<i64: 1, 32>}, {pipeline_mode = #tpu.pipeline_mode<synchronous>, transform_indices = @transform_7, window_bounds = array<i64: 32, 8>}, {pipeline_mode = #tpu.pipeline_mode<synchronous>, transform_indices = @transform_8, window_bounds = array<i64: 1, 8>}, {transform_indices = @transform_9, window_bounds = array<i64: 8, 8>}]} {
    %c0 = arith.constant 0 : index
    %c0_0 = arith.constant 0 : index
    %0 = vector.load %arg1[%c0, %c0_0] : memref<8x16xbf16, #tpu.memory_space<vmem>>, vector<8x16xbf16>
    %c0_1 = arith.constant 0 : index
    %c0_2 = arith.constant 0 : index
    %1 = vector.load %arg2[%c0_1, %c0_2] : memref<16x32xbf16, #tpu.memory_space<vmem>>, vector<16x32xbf16>
    %cst = arith.constant dense<0.000000e+00> : vector<8x32xf32>
    %2 = tpu.matmul %0, %1, %cst {dimension_numbers = #tpu.dot_dimension_numbers<[1], [0], [0], [1], [0, 0, 1, 1], [], []>} : vector<8x16xbf16>, vector<16x32xbf16>, vector<8x32xf32> -> vector<8x32xf32>
    %c0_3 = arith.constant 0 : index
    %c0_4 = arith.constant 0 : index
    %3 = vector.load %arg3[%c0_3, %c0_4] : memref<1x32xf32, #tpu.memory_space<vmem>>, vector<1x32xf32>
    %4 = vector.broadcast %3 : vector<1x32xf32> to vector<8x32xf32>
    %5 = arith.addf %2, %4 : vector<8x32xf32>
    %cst_5 = arith.constant 1.000000e-01 : f32
    %6 = vector.broadcast %cst_5 : f32 to vector<8x32xf32>
    %7 = arith.mulf %6, %5 : vector<8x32xf32>
    %8 = arith.maximumf %5, %7 : vector<8x32xf32>
    %9 = arith.truncf %8 : vector<8x32xf32> to vector<8x32xbf16>
    %c0_6 = arith.constant 0 : index
    %c0_7 = arith.constant 0 : index
    %10 = vector.load %arg4[%c0_6, %c0_7] : memref<32x32xbf16, #tpu.memory_space<vmem>>, vector<32x32xbf16>
    %cst_8 = arith.constant dense<0.000000e+00> : vector<8x32xf32>
    %11 = tpu.matmul %9, %10, %cst_8 {dimension_numbers = #tpu.dot_dimension_numbers<[1], [0], [0], [1], [0, 0, 1, 1], [], []>} : vector<8x32xbf16>, vector<32x32xbf16>, vector<8x32xf32> -> vector<8x32xf32>
    %c0_9 = arith.constant 0 : index
    %c0_10 = arith.constant 0 : index
    %12 = vector.load %arg5[%c0_9, %c0_10] : memref<1x32xf32, #tpu.memory_space<vmem>>, vector<1x32xf32>
    %13 = vector.broadcast %12 : vector<1x32xf32> to vector<8x32xf32>
    %14 = arith.addf %11, %13 : vector<8x32xf32>
    %cst_11 = arith.constant 1.000000e-01 : f32
    %15 = vector.broadcast %cst_11 : f32 to vector<8x32xf32>
    %16 = arith.mulf %15, %14 : vector<8x32xf32>
    %17 = arith.maximumf %14, %16 : vector<8x32xf32>
    %18 = arith.truncf %17 : vector<8x32xf32> to vector<8x32xbf16>
    %c0_12 = arith.constant 0 : index
    %c0_13 = arith.constant 0 : index
    %19 = vector.load %arg6[%c0_12, %c0_13] : memref<32x32xbf16, #tpu.memory_space<vmem>>, vector<32x32xbf16>
    %cst_14 = arith.constant dense<0.000000e+00> : vector<8x32xf32>
    %20 = tpu.matmul %18, %19, %cst_14 {dimension_numbers = #tpu.dot_dimension_numbers<[1], [0], [0], [1], [0, 0, 1, 1], [], []>} : vector<8x32xbf16>, vector<32x32xbf16>, vector<8x32xf32> -> vector<8x32xf32>
    %c0_15 = arith.constant 0 : index
    %c0_16 = arith.constant 0 : index
    %21 = vector.load %arg7[%c0_15, %c0_16] : memref<1x32xf32, #tpu.memory_space<vmem>>, vector<1x32xf32>
    %22 = vector.broadcast %21 : vector<1x32xf32> to vector<8x32xf32>
    %23 = arith.addf %20, %22 : vector<8x32xf32>
    %cst_17 = arith.constant 1.000000e-01 : f32
    %24 = vector.broadcast %cst_17 : f32 to vector<8x32xf32>
    %25 = arith.mulf %24, %23 : vector<8x32xf32>
    %26 = arith.maximumf %23, %25 : vector<8x32xf32>
    %27 = arith.truncf %26 : vector<8x32xf32> to vector<8x32xbf16>
    %c0_18 = arith.constant 0 : index
    %c0_19 = arith.constant 0 : index
    %28 = vector.load %arg8[%c0_18, %c0_19] : memref<32x8xbf16, #tpu.memory_space<vmem>>, vector<32x8xbf16>
    %cst_20 = arith.constant dense<0.000000e+00> : vector<8x8xf32>
    %29 = tpu.matmul %27, %28, %cst_20 {dimension_numbers = #tpu.dot_dimension_numbers<[1], [0], [0], [1], [0, 0, 1, 1], [], []>} : vector<8x32xbf16>, vector<32x8xbf16>, vector<8x8xf32> -> vector<8x8xf32>
    %c0_21 = arith.constant 0 : index
    %c0_22 = arith.constant 0 : index
    %30 = vector.load %arg9[%c0_21, %c0_22] : memref<1x8xf32, #tpu.memory_space<vmem>>, vector<1x8xf32>
    %31 = vector.broadcast %30 : vector<1x8xf32> to vector<8x8xf32>
    %32 = arith.addf %29, %31 : vector<8x8xf32>
    %33 = tpu.iota {dimensions = array<i32: 1>} : vector<8x8xi32>
    %cst_23 = arith.constant -2.000000e+01 : f32
    %cst_24 = arith.constant 2.000000e+00 : f32
    %34 = vector.broadcast %cst_23 : f32 to vector<8x8xf32>
    %35 = arith.maximumf %34, %32 : vector<8x8xf32>
    %36 = vector.broadcast %cst_24 : f32 to vector<8x8xf32>
    %37 = arith.minimumf %36, %35 : vector<8x8xf32>
    %c4_i32 = arith.constant 4 : i32
    %38 = vector.broadcast %c4_i32 : i32 to vector<8x8xi32>
    %39 = arith.cmpi slt, %33, %38 : vector<8x8xi32>
    %40 = arith.select %39, %32, %37 : vector<8x8xi1>, vector<8x8xf32>
    %c0_25 = arith.constant 0 : index
    %c0_26 = arith.constant 0 : index
    %41 = vector.load %arg10[%c0_25, %c0_26] : memref<8x8xf32, #tpu.memory_space<vmem>>, vector<8x8xf32>
    tpu.vector_store %arg10[%c0_25, %c0_26], %40 {strides = array<i32>} : memref<8x8xf32, #tpu.memory_space<vmem>>, vector<8x8xf32>,
    return
  }
  func.func @transform_0(%arg0: i32) -> (i32, i32) {
    %c0_i32 = arith.constant 0 : i32
    %c0_i32_0 = arith.constant 0 : i32
    return %arg0, %c0_i32 : i32, i32
  }
  func.func @transform_1(%arg0: i32) -> (i32, i32) {
    %c0_i32 = arith.constant 0 : i32
    %c0_i32_0 = arith.constant 0 : i32
    %c0_i32_1 = arith.constant 0 : i32
    return %c0_i32, %c0_i32_0 : i32, i32
  }
  func.func @transform_2(%arg0: i32) -> (i32, i32) {
    %c0_i32 = arith.constant 0 : i32
    %c0_i32_0 = arith.constant 0 : i32
    %c0_i32_1 = arith.constant 0 : i32
    return %c0_i32, %c0_i32_0 : i32, i32
  }
  func.func @transform_3(%arg0: i32) -> (i32, i32) {
    %c0_i32 = arith.constant 0 : i32
    %c0_i32_0 = arith.constant 0 : i32
    %c0_i32_1 = arith.constant 0 : i32
    return %c0_i32, %c0_i32_0 : i32, i32
  }
  func.func @transform_4(%arg0: i32) -> (i32, i32) {
    %c0_i32 = arith.constant 0 : i32
    %c0_i32_0 = arith.constant 0 : i32
    %c0_i32_1 = arith.constant 0 : i32
    return %c0_i32, %c0_i32_0 : i32, i32
  }
  func.func @transform_5(%arg0: i32) -> (i32, i32) {
    %c0_i32 = arith.constant 0 : i32
    %c0_i32_0 = arith.constant 0 : i32
    %c0_i32_1 = arith.constant 0 : i32
    return %c0_i32, %c0_i32_0 : i32, i32
  }
  func.func @transform_6(%arg0: i32) -> (i32, i32) {
    %c0_i32 = arith.constant 0 : i32
    %c0_i32_0 = arith.constant 0 : i32
    %c0_i32_1 = arith.constant 0 : i32
    return %c0_i32, %c0_i32_0 : i32, i32
  }
  func.func @transform_7(%arg0: i32) -> (i32, i32) {
    %c0_i32 = arith.constant 0 : i32
    %c0_i32_0 = arith.constant 0 : i32
    %c0_i32_1 = arith.constant 0 : i32
    return %c0_i32, %c0_i32_0 : i32, i32
  }
  func.func @transform_8(%arg0: i32) -> (i32, i32) {
    %c0_i32 = arith.constant 0 : i32
    %c0_i32_0 = arith.constant 0 : i32
    %c0_i32_1 = arith.constant 0 : i32
    return %c0_i32, %c0_i32_0 : i32, i32
  }
  func.func @transform_9(%arg0: i32) -> (i32, i32) {
    %c0_i32 = arith.constant 0 : i32
    %c0_i32_0 = arith.constant 0 : i32
    return %arg0, %c0_i32 : i32, i32
  }
}

</mosaic_0001>

<llo_original>
// kernel: tpu_custom_call.1
$region0: #{tpu_custom_call.1}
  #allocation0 [shape = 'u32[]', space=smem, size = 0x4, offset = 0x4, fixed_abs, tag = 'smem constant byte address 0x4 - core index']
  #allocation1 [shape = 'u32[144,128]{1,0:T(1,128)}', space=vmem, size = 0x12000, scoped, tag = 'internal scratch']
  %s0 = inlined_call_operand.hbm [shape: bf16[8,16], index: 0, kind: input, shape index: {}]
  %s1 = inlined_call_operand.vmem [shape: bf16[16,32], index: 1, kind: input, shape index: {}]
  %s2 = inlined_call_operand.vmem [shape: f32[1,32], index: 2, kind: input, shape index: {}]
  %s3 = inlined_call_operand.vmem [shape: bf16[32,32], index: 3, kind: input, shape index: {}]
  %s4 = inlined_call_operand.hbm [shape: f32[1,32], index: 4, kind: input, shape index: {}]
  %s5 = inlined_call_operand.hbm [shape: bf16[32,32], index: 5, kind: input, shape index: {}]
  %s6 = inlined_call_operand.vmem [shape: f32[1,32], index: 6, kind: input, shape index: {}]
  %s7 = inlined_call_operand.vmem [shape: bf16[32,8], index: 7, kind: input, shape index: {}]
  %s8 = inlined_call_operand.vmem [shape: f32[1,8], index: 8, kind: input, shape index: {}]
  %s9 = inlined_call_operand.hbm [shape: f32[8,8], index: 9, kind: output, shape index: {}]
  %s10 = sld [smem:[#allocation0]]
  $region58: #{tpu_custom_call.1} parent=0
    _
  %s12 = ssub.s32 1, %s10
  %s13 = scalar_select 0, %s12, %s10
  $region1: #{tpu_custom_call.1} parent=0
    #allocation2 [shape = 'u8[2048]{0}', space=vmem, size = 0x800, scoped, tag = 'input window, operand 0, single buffered']
    #allocation3 [shape = 's32[1]{0}', space=sflag, size = 0x4, scoped, tag = 'scoped memory for tpu_custom_call.1']
    #allocation4 [shape = 's32[1]{0}', space=sflag, size = 0x4, scoped, tag = 'scoped memory for tpu_custom_call.1']
    #allocation5 [shape = 'u8[512]{0}', space=vmem, size = 0x400, scoped, tag = 'input window, operand 4, single buffered']
    #allocation6 [shape = 's32[1]{0}', space=sflag, size = 0x4, scoped, tag = 'scoped memory for tpu_custom_call.1']
    #allocation7 [shape = 'u8[8192]{0}', space=vmem, size = 0x2000, scoped, tag = 'input window, operand 5, single buffered']
    #allocation8 [shape = 'u8[4096]{0}', space=vmem, size = 0x1000, scoped, tag = 'output window, operand 0, single buffered']
    %14 = vsyncpa [#allocation3], 0
    %15 = vsyncpa [#allocation6], 0
    %16 = vsyncpa [#allocation4], 0
    // Predicated region
    $region2: #{tpu_custom_call.1} parent=1 // pred_check
      _
    $region3: #{tpu_custom_call.1} parent=1 // pred_check_branch
      %18 = sbr.rel (0) target = $region5
    $region4: #{tpu_custom_call.1} parent=1 // pred_region
      %s20 = ssub.s32 64, 64
      %21 = vsyncadd [#allocation3], %s20
      %s23 = sshll.u32 [#allocation2], 4
      %s24 = int_to_ptr.vmem [resolvable:$true] %s23
      %26 = dma.hbm_to_vmem [thread:$0]  %s0, 64, %s24, [#allocation3]
    $region5: #{tpu_custom_call.1} parent=1 // pred_fallthru
      _
    // Predicated region
    $region6: #{tpu_custom_call.1} parent=1 // pred_check
      _
    $region7: #{tpu_custom_call.1} parent=1 // pred_check_branch
      %28 = sbr.rel (0) target = $region9
    $region8: #{tpu_custom_call.1} parent=1 // pred_region
      _
    $region9: #{tpu_custom_call.1} parent=1 // pred_fallthru
      _
    // Predicated region
    $region10: #{tpu_custom_call.1} parent=1 // pred_check
      _
    $region11: #{tpu_custom_call.1} parent=1 // pred_check_branch
      %30 = sbr.rel (0) target = $region13
    $region12: #{tpu_custom_call.1} parent=1 // pred_region
      _
    $region13: #{tpu_custom_call.1} parent=1 // pred_fallthru
      _
    // Predicated region
    $region14: #{tpu_custom_call.1} parent=1 // pred_check
      _
    $region15: #{tpu_custom_call.1} parent=1 // pred_check_branch
      %32 = sbr.rel (0) target = $region17
    $region16: #{tpu_custom_call.1} parent=1 // pred_region
      _
    $region17: #{tpu_custom_call.1} parent=1 // pred_fallthru
      _
    // Predicated region
    $region18: #{tpu_custom_call.1} parent=1 // pred_check
      _
    $region19: #{tpu_custom_call.1} parent=1 // pred_check_branch
      %34 = sbr.rel (0) target = $region21
    $region20: #{tpu_custom_call.1} parent=1 // pred_region
      %s36 = ssub.s32 16, 16
      %37 = vsyncadd [#allocation6], %s36
      %s39 = sshll.u32 [#allocation5], 4
      %s40 = int_to_ptr.vmem [resolvable:$true] %s39
      %42 = dma.hbm_to_vmem [thread:$0]  %s4, 16, %s40, [#allocation6]
    $region21: #{tpu_custom_call.1} parent=1 // pred_fallthru
      _
    // Predicated region
    $region22: #{tpu_custom_call.1} parent=1 // pred_check
      _
    $region23: #{tpu_custom_call.1} parent=1 // pred_check_branch
      %44 = sbr.rel (0) target = $region25
    $region24: #{tpu_custom_call.1} parent=1 // pred_region
      %s46 = ssub.s32 256, 256
      %47 = vsyncadd [#allocation6], %s46
      %s48 = sshll.u32 [#allocation7], 4
      %s49 = int_to_ptr.vmem [resolvable:$true] %s48
      %54 = dma.hbm_to_vmem [thread:$0]  %s5, 256, %s49, [#allocation6], 64, 64, 4
    $region25: #{tpu_custom_call.1} parent=1 // pred_fallthru
      _
    // Predicated region
    $region26: #{tpu_custom_call.1} parent=1 // pred_check
      _
    $region27: #{tpu_custom_call.1} parent=1 // pred_check_branch
      %56 = sbr.rel (0) target = $region29
    $region28: #{tpu_custom_call.1} parent=1 // pred_region
      _
    $region29: #{tpu_custom_call.1} parent=1 // pred_fallthru
      _
    // Predicated region
    $region30: #{tpu_custom_call.1} parent=1 // pred_check
      _
    $region31: #{tpu_custom_call.1} parent=1 // pred_check_branch
      %58 = sbr.rel (0) target = $region33
    $region32: #{tpu_custom_call.1} parent=1 // pred_region
      _
    $region33: #{tpu_custom_call.1} parent=1 // pred_fallthru
      _
    // Predicated region
    $region34: #{tpu_custom_call.1} parent=1 // pred_check
      _
    $region35: #{tpu_custom_call.1} parent=1 // pred_check_branch
      %60 = sbr.rel (0) target = $region37
    $region36: #{tpu_custom_call.1} parent=1 // pred_region
      _
    $region37: #{tpu_custom_call.1} parent=1 // pred_fallthru
      _
    // Predicated region
    $region38: #{tpu_custom_call.1} parent=1 // pred_check
      _
    $region39: #{tpu_custom_call.1} parent=1 // pred_check_branch
      %62 = sbr.rel (0) target = $region41
    $region40: #{tpu_custom_call.1} parent=1 // pred_region
      %63 = dma.done [#allocation3], 64
    $region41: #{tpu_custom_call.1} parent=1 // pred_fallthru
      _
    // Predicated region
    $region42: #{tpu_custom_call.1} parent=1 // pred_check
      _
    $region43: #{tpu_custom_call.1} parent=1 // pred_check_branch
      %65 = sbr.rel (0) target = $region45
    $region44: #{tpu_custom_call.1} parent=1 // pred_region
      %66 = dma.done [#allocation6], 16
    $region45: #{tpu_custom_call.1} parent=1 // pred_fallthru
      _
    // Predicated region
    $region46: #{tpu_custom_call.1} parent=1 // pred_check
      _
    $region47: #{tpu_custom_call.1} parent=1 // pred_check_branch
      %68 = sbr.rel (0) target = $region49
    $region48: #{tpu_custom_call.1} parent=1 // pred_region
      %69 = dma.done [#allocation6], 256
    $region49: #{tpu_custom_call.1} parent=1 // pred_fallthru
      _
    %v71 = vld [vmem:[#allocation2] sm:$0xf]
    %v72 = vld [vmem:[%s1] sm:$0xf]
    %v73 = vld [vmem:[%s1 + $0x4] sm:$0xf]
    %v74 = vld [vmem:[%s2] sm:$0x1]
    %v76 = vlaneseq
    %v77 = vshrl.u32 %v76, 7
    %v78 = vsub.s32 0, %v77
    %v79 = vrot.slane %v74, %v78
    %v83 = vunpack.c.l.b16 %v72
    %v84 = vunpack.c.l.b16 %v73
    %v85 = vpack.c.b16 %v84, %v83
    %vm87 = vcmask 130048
    %v89 = vsel %vm87, %v71, 0
    %91 = vmatprep.subr.bf16.mxu0 0
    %92 = vmatpush1.bf16.msra.mxu0 0
    %93 = vmatprep.subr.bf16.mxu0 0
    %94 = vmatpush1.bf16.msra.mxu0 0
    %95 = vmatprep.subr.bf16.mxu0 0
    %96 = vmatpush1.bf16.msra.mxu0 0
    %97 = vmatprep.subr.bf16.mxu0 0
    %98 = vmatpush1.bf16.msra.mxu0 0
    %99 = vmatprep.subr.bf16.mxu0 0
    %100 = vmatpush1.bf16.msra.mxu0 0
    %101 = vmatprep.subr.bf16.mxu0 0
    %102 = vmatpush1.bf16.msra.mxu0 0
    %103 = vmatprep.subr.bf16.mxu0 0
    %104 = vmatpush1.bf16.msra.mxu0 0
    %105 = vmatprep.subr.bf16.mxu0 0
    %106 = vmatpush1.bf16.msra.mxu0 %v85
    %107 = vmatprep.subr.bf16.mxu0 0
    %108 = vmatpush2.bf16.msra.mxu0 0
    %109 = vmatprep.subr.bf16.mxu0 0
    %110 = vmatpush2.bf16.msra.mxu0 0
    %111 = vmatprep.subr.bf16.mxu0 0
    %112 = vmatpush2.bf16.msra.mxu0 0
    %113 = vmatprep.subr.bf16.mxu0 0
    %114 = vmatpush2.bf16.msra.mxu0 0
    %115 = vmatprep.subr.bf16.mxu0 0
    %116 = vmatpush2.bf16.msra.mxu0 0
    %117 = vmatprep.subr.bf16.mxu0 0
    %118 = vmatpush2.bf16.msra.mxu0 0
    %119 = vmatprep.subr.bf16.mxu0 0
    %120 = vmatpush2.bf16.msra.mxu0 0
    %121 = vmatprep.subr.bf16.mxu0 0
    %122 = vmatpush2.bf16.msra.mxu0 0
    %123 = vmatprep.mubr.bf16.mxu0 0
    %124 = vmatmul.mubr.bf16.gmra.mxu0 %v89
    %v125 = vpop.f32.mrf.mxu0
    %v126 = vadd.f32 %v79, %v125
    %v127 = vpop.f32.mrf.mxu0
    %v128 = vpop.f32.mrf.mxu0
    %v129 = vpop.f32.mrf.mxu0
    %130 = vdwg.mxu0
    %v131 = vmul.f32 %v126, 0.1
    %v132 = vmax.f32 %v126, %v131
    %v133 = vpack.c.bf16 %v132, %v132
    %v134 = vld [vmem:[%s3] sm:$0xf]
    %v135 = vld [vmem:[%s3 + $0x4] sm:$0xf]
    %v136 = vld [vmem:[%s3 + $0x8] sm:$0xf]
    %v137 = vld [vmem:[%s3 + $0xc] sm:$0xf]
    %v138 = vld [vmem:[#allocation5] sm:$0x1]
    %v140 = vlaneseq
    %v141 = vshrl.u32 %v140, 7
    %v142 = vsub.s32 0, %v141
    %v143 = vrot.slane %v138, %v142
    %v149 = vunpack.c.l.b16 %v134
    %v150 = vunpack.c.l.b16 %v135
    %v151 = vunpack.c.l.b16 %v136
    %v152 = vunpack.c.l.b16 %v137
    %v153 = vpack.c.b16 %v150, %v149
    %v154 = vpack.c.b16 %v152, %v151
    %vm157 = vcmask 261120
    %v159 = vsel %vm157, %v133, 0
    %161 = vmatprep.subr.bf16.mxu0 0
    %162 = vmatpush1.bf16.msra.mxu0 0
    %163 = vmatprep.subr.bf16.mxu0 0
    %164 = vmatpush1.bf16.msra.mxu0 0
    %165 = vmatprep.subr.bf16.mxu0 0
    %166 = vmatpush1.bf16.msra.mxu0 0
    %167 = vmatprep.subr.bf16.mxu0 0
    %168 = vmatpush1.bf16.msra.mxu0 0
    %169 = vmatprep.subr.bf16.mxu0 0
    %170 = vmatpush1.bf16.msra.mxu0 0
    %171 = vmatprep.subr.bf16.mxu0 0
    %172 = vmatpush1.bf16.msra.mxu0 0
    %173 = vmatprep.subr.bf16.mxu0 0
    %174 = vmatpush1.bf16.msra.mxu0 %v154
    %175 = vmatprep.subr.bf16.mxu0 0
    %176 = vmatpush1.bf16.msra.mxu0 %v153
    %177 = vmatprep.subr.bf16.mxu0 0
    %178 = vmatpush2.bf16.msra.mxu0 0
    %179 = vmatprep.subr.bf16.mxu0 0
    %180 = vmatpush2.bf16.msra.mxu0 0
    %181 = vmatprep.subr.bf16.mxu0 0
    %182 = vmatpush2.bf16.msra.mxu0 0
    %183 = vmatprep.subr.bf16.mxu0 0
    %184 = vmatpush2.bf16.msra.mxu0 0
    %185 = vmatprep.subr.bf16.mxu0 0
    %186 = vmatpush2.bf16.msra.mxu0 0
    %187 = vmatprep.subr.bf16.mxu0 0
    %188 = vmatpush2.bf16.msra.mxu0 0
    %189 = vmatprep.subr.bf16.mxu0 0
    %190 = vmatpush2.bf16.msra.mxu0 0
    %191 = vmatprep.subr.bf16.mxu0 0
    %192 = vmatpush2.bf16.msra.mxu0 0
    %193 = vmatprep.mubr.bf16.mxu0 0
    %194 = vmatmul.mubr.bf16.gmra.mxu0 %v159
    %v195 = vpop.f32.mrf.mxu0
    %v196 = vadd.f32 %v143, %v195
    %v197 = vpop.f32.mrf.mxu0
    %v198 = vpop.f32.mrf.mxu0
    %v199 = vpop.f32.mrf.mxu0
    %200 = vdwg.mxu0
    %v201 = vmul.f32 %v196, 0.1
    %v202 = vmax.f32 %v196, %v201
    %v203 = vpack.c.bf16 %v202, %v202
    %v204 = vld [vmem:[#allocation7] sm:$0xf]
    %v205 = vld [vmem:[#allocation7 + $0x4] sm:$0xf]
    %v206 = vld [vmem:[#allocation7 + $0x8] sm:$0xf]
    %v207 = vld [vmem:[#allocation7 + $0xc] sm:$0xf]
    %v208 = vld [vmem:[%s6] sm:$0x1]
    %v210 = vlaneseq
    %v211 = vshrl.u32 %v210, 7
    %v212 = vsub.s32 0, %v211
    %v213 = vrot.slane %v208, %v212
    %v219 = vunpack.c.l.b16 %v204
    %v220 = vunpack.c.l.b16 %v205
    %v221 = vunpack.c.l.b16 %v206
    %v222 = vunpack.c.l.b16 %v207
    %v223 = vpack.c.b16 %v220, %v219
    %v224 = vpack.c.b16 %v222, %v221
    %v228 = vsel %vm157, %v203, 0
    %230 = vmatprep.subr.bf16.mxu0 0
    %231 = vmatpush1.bf16.msra.mxu0 0
    %232 = vmatprep.subr.bf16.mxu0 0
    %233 = vmatpush1.bf16.msra.mxu0 0
    %234 = vmatprep.subr.bf16.mxu0 0
    %235 = vmatpush1.bf16.msra.mxu0 0
    %236 = vmatprep.subr.bf16.mxu0 0
    %237 = vmatpush1.bf16.msra.mxu0 0
    %238 = vmatprep.subr.bf16.mxu0 0
    %239 = vmatpush1.bf16.msra.mxu0 0
    %240 = vmatprep.subr.bf16.mxu0 0
    %241 = vmatpush1.bf16.msra.mxu0 0
    %242 = vmatprep.subr.bf16.mxu0 0
    %243 = vmatpush1.bf16.msra.mxu0 %v224
    %244 = vmatprep.subr.bf16.mxu0 0
    %245 = vmatpush1.bf16.msra.mxu0 %v223
    %246 = vmatprep.subr.bf16.mxu0 0
    %247 = vmatpush2.bf16.msra.mxu0 0
    %248 = vmatprep.subr.bf16.mxu0 0
    %249 = vmatpush2.bf16.msra.mxu0 0
    %250 = vmatprep.subr.bf16.mxu0 0
    %251 = vmatpush2.bf16.msra.mxu0 0
    %252 = vmatprep.subr.bf16.mxu0 0
    %253 = vmatpush2.bf16.msra.mxu0 0
    %254 = vmatprep.subr.bf16.mxu0 0
    %255 = vmatpush2.bf16.msra.mxu0 0
    %256 = vmatprep.subr.bf16.mxu0 0
    %257 = vmatpush2.bf16.msra.mxu0 0
    %258 = vmatprep.subr.bf16.mxu0 0
    %259 = vmatpush2.bf16.msra.mxu0 0
    %260 = vmatprep.subr.bf16.mxu0 0
    %261 = vmatpush2.bf16.msra.mxu0 0
    %262 = vmatprep.mubr.bf16.mxu0 0
    %263 = vmatmul.mubr.bf16.gmra.mxu0 %v228
    %v264 = vpop.f32.mrf.mxu0
    %v265 = vadd.f32 %v213, %v264
    %v266 = vpop.f32.mrf.mxu0
    %v267 = vpop.f32.mrf.mxu0
    %v268 = vpop.f32.mrf.mxu0
    %269 = vdwg.mxu0
    %v270 = vmul.f32 %v265, 0.1
    %v271 = vmax.f32 %v265, %v270
    %v272 = vpack.c.bf16 %v271, %v271
    %v273 = vld [vmem:[%s7] sm:$0xf]
    %v274 = vld [vmem:[%s7 + $0x4] sm:$0xf]
    %v275 = vld [vmem:[%s7 + $0x8] sm:$0xf]
    %v276 = vld [vmem:[%s7 + $0xc] sm:$0xf]
    %v277 = vld [vmem:[%s8] sm:$0x1]
    %v279 = vlaneseq
    %v280 = vshrl.u32 %v279, 7
    %v281 = vsub.s32 0, %v280
    %v282 = vrot.slane %v277, %v281
    %v288 = vunpack.c.l.b16 %v273
    %v289 = vunpack.c.l.b16 %v274
    %v290 = vunpack.c.l.b16 %v275
    %v291 = vunpack.c.l.b16 %v276
    %v292 = vpack.c.b16 %v289, %v288
    %v293 = vpack.c.b16 %v291, %v290
    %v297 = vsel %vm157, %v272, 0
    %299 = vmatprep.subr.bf16.mxu0 0
    %300 = vmatpush1.bf16.msra.mxu0 0
    %301 = vmatprep.subr.bf16.mxu0 0
    %302 = vmatpush1.bf16.msra.mxu0 0
    %303 = vmatprep.subr.bf16.mxu0 0
    %304 = vmatpush1.bf16.msra.mxu0 0
    %305 = vmatprep.subr.bf16.mxu0 0
    %306 = vmatpush1.bf16.msra.mxu0 0
    %307 = vmatprep.subr.bf16.mxu0 0
    %308 = vmatpush1.bf16.msra.mxu0 0
    %309 = vmatprep.subr.bf16.mxu0 0
    %310 = vmatpush1.bf16.msra.mxu0 0
    %311 = vmatprep.subr.bf16.mxu0 0
    %312 = vmatpush1.bf16.msra.mxu0 %v293
    %313 = vmatprep.subr.bf16.mxu0 0
    %314 = vmatpush1.bf16.msra.mxu0 %v292
    %315 = vmatprep.subr.bf16.mxu0 0
    %316 = vmatpush2.bf16.msra.mxu0 0
    %317 = vmatprep.subr.bf16.mxu0 0
    %318 = vmatpush2.bf16.msra.mxu0 0
    %319 = vmatprep.subr.bf16.mxu0 0
    %320 = vmatpush2.bf16.msra.mxu0 0
    %321 = vmatprep.subr.bf16.mxu0 0
    %322 = vmatpush2.bf16.msra.mxu0 0
    %323 = vmatprep.subr.bf16.mxu0 0
    %324 = vmatpush2.bf16.msra.mxu0 0
    %325 = vmatprep.subr.bf16.mxu0 0
    %326 = vmatpush2.bf16.msra.mxu0 0
    %327 = vmatprep.subr.bf16.mxu0 0
    %328 = vmatpush2.bf16.msra.mxu0 0
    %329 = vmatprep.subr.bf16.mxu0 0
    %330 = vmatpush2.bf16.msra.mxu0 0
    %331 = vmatprep.mubr.bf16.mxu0 0
    %332 = vmatmul.mubr.bf16.gmra.mxu0 %v297
    %v333 = vpop.f32.mrf.mxu0
    %v334 = vadd.f32 %v282, %v333
    %v335 = vpop.f32.mrf.mxu0
    %v336 = vpop.f32.mrf.mxu0
    %v337 = vpop.f32.mrf.mxu0
    %338 = vdwg.mxu0
    %v339 = vlaneseq
    %v340 = vand.u32 %v339, 127
    %v341 = vmax.f32 %v334, -20.0
    %v342 = vmin.f32 %v341, 2.0
    %vm343 = vcmp.lt.s32.totalorder %v340, 4
    %v344 = vsel %vm343, %v334, %v342
    %vm345 = vcmask 64512
    %346 = vst.msk [vmem:[#allocation8] sm:$0xff] %vm345, %v344
    // Predicated region
    $region50: #{tpu_custom_call.1} parent=1 // pred_check
      _
    $region51: #{tpu_custom_call.1} parent=1 // pred_check_branch
      %348 = sbr.rel (0) target = $region53
    $region52: #{tpu_custom_call.1} parent=1 // pred_region
      %s350 = ssub.s32 128, 128
      %351 = vsyncadd [#allocation4], %s350
      %s353 = sshll.u32 [#allocation8], 4
      %s354 = int_to_ptr.vmem [resolvable:$true] %s353
      %356 = dma.vmem_to_hbm [thread:$0]  %s354, 128, %s9, [#allocation4]
    $region53: #{tpu_custom_call.1} parent=1 // pred_fallthru
      _
    // Predicated region
    $region54: #{tpu_custom_call.1} parent=1 // pred_check
      _
    $region55: #{tpu_custom_call.1} parent=1 // pred_check_branch
      %358 = sbr.rel (0) target = $region57
    $region56: #{tpu_custom_call.1} parent=1 // pred_region
      %359 = dma.done [#allocation4], 128
    $region57: #{tpu_custom_call.1} parent=1 // pred_fallthru
      _
    %360 = vsyncpa [#allocation3], 1
    %361 = vsyncpa [#allocation6], 1
    %362 = vsyncpa [#allocation4], 1

</llo_original>
